<compile_context>
chip_gen: v6e
topology: v6e:2x2x1
jax: 0.10.0
libtpu: 0.0.40
codegen_flags: <defaults>
</compile_context>

<pallas_src>
import jax
import jax.numpy as jnp
from jax.experimental import pallas as pl
from jax.experimental.pallas import tpu as pltpu


def _round_up(n: int, m: int) -> int:
    return ((n + m - 1) // m) * m


def _mlp_kernel(params_ref, xT_ref, o_ref):
    # params_ref: SMEM f32[13] = [W1(2x4, row-major) | b1(2) | W2(1x2) | b2(1)]
    # xT_ref:     VMEM (4, TB)  -- batch on the lane axis
    # o_ref:      VMEM (1, TB)
    x = xT_ref[...]                                   # (4, TB)
    x0 = x[0:1, :]
    x1 = x[1:2, :]
    x2 = x[2:3, :]
    x3 = x[3:4, :]

    # First linear (4 -> 2) + ReLU: pure VPU FMAs with SMEM scalar weights.
    def hidden(j):
        base = j * 4
        h = (params_ref[base + 0] * x0
             + params_ref[base + 1] * x1
             + params_ref[base + 2] * x2
             + params_ref[base + 3] * x3
             + params_ref[8 + j])
        return jnp.maximum(h, 0.0)

    h0 = hidden(0)
    h1 = hidden(1)

    # Second linear (2 -> 1).
    y = params_ref[10] * h0 + params_ref[11] * h1 + params_ref[12]
    o_ref[...] = y.astype(o_ref.dtype)                # (1, TB), lane-dense store


def mlp_forward(x, W1, b1, W2, b2, *, block_b=1024):
    """x: (B, 4) float32. W1: (2,4), b1: (2,), W2: (1,2), b2: (1,) in PyTorch
    [out, in] layout. Returns (B, 1) float32 = relu(x @ W1.T + b1) @ W2.T + b2."""
    x = x.astype(jnp.float32)
    B, F = x.shape
    assert F == 4, "net expects 4 input features"

    # Batch tile: multiple of 128 lanes, capped at block_b (block_b itself is a
    # multiple of 128). Small enough to be well under VMEM on v7x/v6e/v5e.
    TB = min(block_b, _round_up(B, 128))
    Bp = _round_up(B, TB)

    # Transpose so batch is the lane (last) axis; pad batch to a tile multiple.
    xT = x.T                                          # (4, B)
    if Bp != B:
        xT = jnp.pad(xT, ((0, 0), (0, Bp - B)))

    # Flatten the 13 parameters into one SMEM scalar table.
    params = jnp.concatenate(
        [W1.reshape(-1), b1.reshape(-1), W2.reshape(-1), b2.reshape(-1)]
    ).astype(jnp.float32)                             # (13,)

    grid = (Bp // TB,)
    outT = pl.pallas_call(
        _mlp_kernel,
        out_shape=jax.ShapeDtypeStruct((1, Bp), jnp.float32),
        grid_spec=pltpu.PrefetchScalarGridSpec(
            num_scalar_prefetch=0,
            grid=grid,
            in_specs=[
                # 13 weight/bias scalars, whole array in SMEM (no VMEM tiles).
                pl.BlockSpec(memory_space=pltpu.MemorySpace.SMEM),
                # x streamed batch-tile by batch-tile, lane-dense.
                pl.BlockSpec((4, TB), lambda i: (0, i)),
            ],
            out_specs=pl.BlockSpec((1, TB), lambda i: (0, i)),
        ),
        compiler_params=pltpu.CompilerParams(
            # Batch tiles are independent -> shard across TCs on v7x.
            dimension_semantics=("parallel",),
        ),
    )(params, xT)

    return outT[0, :B].reshape(B, 1)


if __name__ == "__main__":
    key = jax.random.PRNGKey(0)
    kx, k1, k2, k3, k4 = jax.random.split(key, 5)

    # Small-but-nontrivial batch; not a multiple of 128 to exercise padding,
    # and > block_b=512 so the grid has >1 step (pipelining exercised).
    B = 1000
    x = jax.random.normal(kx, (B, 4), dtype=jnp.float32)

    # Parameters in PyTorch layout: W is [out_features, in_features].
    W1 = jax.random.normal(k1, (2, 4), dtype=jnp.float32) * 0.5
    b1 = jax.random.normal(k2, (2,), dtype=jnp.float32) * 0.1
    W2 = jax.random.normal(k3, (1, 2), dtype=jnp.float32) * 0.5
    b2 = jax.random.normal(k4, (1,), dtype=jnp.float32) * 0.1

    out = mlp_forward(x, W1, b1, W2, b2, block_b=512)
    out = jax.block_until_ready(out)

    # Reference check in plain JAX (same math as the PyTorch forward).
    ref = jnp.maximum(x @ W1.T + b1, 0.0) @ W2.T + b2
    assert out.shape == (B, 1)
    assert jnp.allclose(out, ref, atol=1e-5, rtol=1e-5)

    print("KERNEL_OK")
</pallas_src>

<mosaic_0001>
module attributes {stable_mosaic.version = 11 : i64} {
  func.func @_mlp_kernel(%arg0: i32, %arg1: memref<13xf32, #tpu.memory_space<smem>>, %arg2: memref<4x512xf32, #tpu.memory_space<vmem>>, %arg3: memref<1x512xf32, #tpu.memory_space<vmem>>) attributes {dimension_semantics = [#tpu.dimension_semantics<parallel>], iteration_bounds = array<i64: 2>, scalar_prefetch = 0 : i64, scratch_operands = 0 : i64, tpu.core_type = #tpu.core_type<tc>, window_params = [{transform_indices = @transform_0, window_bounds = array<i64: 13>}, {transform_indices = @transform_1, window_bounds = array<i64: 4, 512>}, {transform_indices = @transform_2, window_bounds = array<i64: 1, 512>}]} {
    %c0 = arith.constant 0 : index
    %c0_0 = arith.constant 0 : index
    %0 = vector.load %arg2[%c0, %c0_0] : memref<4x512xf32, #tpu.memory_space<vmem>>, vector<4x512xf32>
    %1 = vector.extract_strided_slice %0 {offsets = [0, 0], sizes = [1, 512], strides = [1, 1]} : vector<4x512xf32> to vector<1x512xf32>
    %2 = vector.extract_strided_slice %0 {offsets = [1, 0], sizes = [1, 512], strides = [1, 1]} : vector<4x512xf32> to vector<1x512xf32>
    %3 = vector.extract_strided_slice %0 {offsets = [2, 0], sizes = [1, 512], strides = [1, 1]} : vector<4x512xf32> to vector<1x512xf32>
    %4 = vector.extract_strided_slice %0 {offsets = [3, 0], sizes = [1, 512], strides = [1, 1]} : vector<4x512xf32> to vector<1x512xf32>
    %c0_1 = arith.constant 0 : index
    %5 = memref.load %arg1[%c0_1] : memref<13xf32, #tpu.memory_space<smem>>
    %6 = vector.broadcast %5 : f32 to vector<1x512xf32>
    %7 = arith.mulf %6, %1 : vector<1x512xf32>
    %c1 = arith.constant 1 : index
    %8 = memref.load %arg1[%c1] : memref<13xf32, #tpu.memory_space<smem>>
    %9 = vector.broadcast %8 : f32 to vector<1x512xf32>
    %10 = arith.mulf %9, %2 : vector<1x512xf32>
    %11 = arith.addf %7, %10 : vector<1x512xf32>
    %c2 = arith.constant 2 : index
    %12 = memref.load %arg1[%c2] : memref<13xf32, #tpu.memory_space<smem>>
    %13 = vector.broadcast %12 : f32 to vector<1x512xf32>
    %14 = arith.mulf %13, %3 : vector<1x512xf32>
    %15 = arith.addf %11, %14 : vector<1x512xf32>
    %c3 = arith.constant 3 : index
    %16 = memref.load %arg1[%c3] : memref<13xf32, #tpu.memory_space<smem>>
    %17 = vector.broadcast %16 : f32 to vector<1x512xf32>
    %18 = arith.mulf %17, %4 : vector<1x512xf32>
    %19 = arith.addf %15, %18 : vector<1x512xf32>
    %c8 = arith.constant 8 : index
    %20 = memref.load %arg1[%c8] : memref<13xf32, #tpu.memory_space<smem>>
    %21 = vector.broadcast %20 : f32 to vector<1x512xf32>
    %22 = arith.addf %19, %21 : vector<1x512xf32>
    %cst = arith.constant 0.000000e+00 : f32
    %23 = vector.broadcast %cst : f32 to vector<1x512xf32>
    %24 = arith.maximumf %22, %23 : vector<1x512xf32>
    %c4 = arith.constant 4 : index
    %25 = memref.load %arg1[%c4] : memref<13xf32, #tpu.memory_space<smem>>
    %26 = vector.broadcast %25 : f32 to vector<1x512xf32>
    %27 = arith.mulf %26, %1 : vector<1x512xf32>
    %c5 = arith.constant 5 : index
    %28 = memref.load %arg1[%c5] : memref<13xf32, #tpu.memory_space<smem>>
    %29 = vector.broadcast %28 : f32 to vector<1x512xf32>
    %30 = arith.mulf %29, %2 : vector<1x512xf32>
    %31 = arith.addf %27, %30 : vector<1x512xf32>
    %c6 = arith.constant 6 : index
    %32 = memref.load %arg1[%c6] : memref<13xf32, #tpu.memory_space<smem>>
    %33 = vector.broadcast %32 : f32 to vector<1x512xf32>
    %34 = arith.mulf %33, %3 : vector<1x512xf32>
    %35 = arith.addf %31, %34 : vector<1x512xf32>
    %c7 = arith.constant 7 : index
    %36 = memref.load %arg1[%c7] : memref<13xf32, #tpu.memory_space<smem>>
    %37 = vector.broadcast %36 : f32 to vector<1x512xf32>
    %38 = arith.mulf %37, %4 : vector<1x512xf32>
    %39 = arith.addf %35, %38 : vector<1x512xf32>
    %c9 = arith.constant 9 : index
    %40 = memref.load %arg1[%c9] : memref<13xf32, #tpu.memory_space<smem>>
    %41 = vector.broadcast %40 : f32 to vector<1x512xf32>
    %42 = arith.addf %39, %41 : vector<1x512xf32>
    %cst_2 = arith.constant 0.000000e+00 : f32
    %43 = vector.broadcast %cst_2 : f32 to vector<1x512xf32>
    %44 = arith.maximumf %42, %43 : vector<1x512xf32>
    %c10 = arith.constant 10 : index
    %45 = memref.load %arg1[%c10] : memref<13xf32, #tpu.memory_space<smem>>
    %46 = vector.broadcast %45 : f32 to vector<1x512xf32>
    %47 = arith.mulf %46, %24 : vector<1x512xf32>
    %c11 = arith.constant 11 : index
    %48 = memref.load %arg1[%c11] : memref<13xf32, #tpu.memory_space<smem>>
    %49 = vector.broadcast %48 : f32 to vector<1x512xf32>
    %50 = arith.mulf %49, %44 : vector<1x512xf32>
    %51 = arith.addf %47, %50 : vector<1x512xf32>
    %c12 = arith.constant 12 : index
    %52 = memref.load %arg1[%c12] : memref<13xf32, #tpu.memory_space<smem>>
    %53 = vector.broadcast %52 : f32 to vector<1x512xf32>
    %54 = arith.addf %51, %53 : vector<1x512xf32>
    %c0_3 = arith.constant 0 : index
    %c0_4 = arith.constant 0 : index
    %55 = vector.load %arg3[%c0_3, %c0_4] : memref<1x512xf32, #tpu.memory_space<vmem>>, vector<1x512xf32>
    tpu.vector_store %arg3[%c0_3, %c0_4], %54 {strides = array<i32>} : memref<1x512xf32, #tpu.memory_space<vmem>>, vector<1x512xf32>,
    return
  }
  func.func @transform_0(%arg0: i32) -> i32 {
    %c0_i32 = arith.constant 0 : i32
    %c0_i32_0 = arith.constant 0 : i32
    return %c0_i32 : i32
  }
  func.func @transform_1(%arg0: i32) -> (i32, i32) {
    %c0_i32 = arith.constant 0 : i32
    %c0_i32_0 = arith.constant 0 : i32
    return %c0_i32, %arg0 : i32, i32
  }
  func.func @transform_2(%arg0: i32) -> (i32, i32) {
    %c0_i32 = arith.constant 0 : i32
    %c0_i32_0 = arith.constant 0 : i32
    return %c0_i32, %arg0 : i32, i32
  }
}

</mosaic_0001>

<llo_original>
// kernel: tpu_custom_call.1
$region0: #{tpu_custom_call.1}
  #allocation0 [shape = 'u32[]', space=smem, size = 0x4, offset = 0x4, fixed_abs, tag = 'smem constant byte address 0x4 - core index']
  #allocation1 [shape = 'u32[144,128]{1,0:T(1,128)}', space=vmem, size = 0x12000, scoped, tag = 'internal scratch']
  %s0 = inlined_call_operand.hbm [shape: f32[13], index: 0, kind: input, shape index: {}]
  %s1 = inlined_call_operand.hbm [shape: f32[4,1024], index: 1, kind: input, shape index: {}]
  %s2 = inlined_call_operand.hbm [shape: f32[1,1024], index: 2, kind: output, shape index: {}]
  %s3 = sld [smem:[#allocation0]]
  $region49: #{tpu_custom_call.1} parent=0
    _
  %s5 = ssub.s32 1, %s3
  %s6 = scalar_select 0, %s5, %s3
  $region1: #{tpu_custom_call.1} parent=0
    #allocation2 [shape = 'u8[512]{0}', space=smem, size = 0x200, scoped, tag = 'input window, operand 0, single buffered']
    #allocation3 [shape = 's32[2]{0}', space=sflag, size = 0x8, scoped, tag = 'scoped memory for tpu_custom_call.1']
    #allocation4 [shape = 's32[2]{0}', space=sflag, size = 0x8, scoped, tag = 'scoped memory for tpu_custom_call.1']
    #allocation5 [shape = 's32[2]{0}', space=sflag, size = 0x8, scoped, tag = 'scoped memory for tpu_custom_call.1']
    #allocation6 [shape = 'u8[16384]{0}', space=vmem, size = 0x4000, scoped, tag = 'input window, operand 1']
    #allocation7 [shape = 'u8[4096]{0}', space=vmem, size = 0x1000, scoped, tag = 'output window, operand 0']
    %7 = vsyncpa [#allocation5], 0
    %8 = vsyncpa [#allocation3], 0
    %s9 = scalar_lea.sflag [#allocation3], 1
    %10 = vsyncpa %s9, 0
    %11 = vsyncpa [#allocation4], 0
    %s12 = scalar_lea.sflag [#allocation4], 1
    %13 = vsyncpa %s12, 0
    loop: start=0, step=1, limit=4
    $region2: #{tpu_custom_call.1} parent=1 // loop_pre_header
      _
    $region3: #{tpu_custom_call.1} parent=1 // loop_header
      %s15 = sphi 0, %s19
      %p16 = scmp.ge.s32.totalorder %s15, 4
      %s23 = sphi 0, %s23
      %s25 = sphi 0, %s23
      %s26 = sphi 0, %s25
      %s40 = sphi 0, %s26
      %s46 = sphi 0, %s48
      %s49 = sphi 0, %s46
      %s50 = sphi 0, %s49
      %s66 = sphi 0, %s50
      %s72 = sphi 0, %s74
      %s75 = sphi 0, %s72
      %s76 = sphi 0, %s75
      %s92 = sphi 0, %s76
    $region4: #{tpu_custom_call.1} parent=1 // loop_header_branch
      %18 = sbr.rel (%p16) target = $region8
    $region5: #{tpu_custom_call.1} parent=1 // loop_body
      %s20 = ssub.s32 %s15, 1
      %s21 = ssub.s32 %s15, 2
      %s22 = sadd.s32 %s15, 1
      %s24 = sadd.s32 %s23, 1
      %p27 = scmp.eq.s32.totalorder %s15, 1
      %p28 = scmp.ne.s32.totalorder %s23, %s25
      %p29 = scmp.eq.s32.totalorder %s15, 0
      %p30 = por %p28, %p29
      %p31 = scmp.ne.s32.totalorder %s23, %s25
      %p32 = scmp.eq.s32.totalorder %s20, 1
      %p33 = por %p31, %p32
      %p34 = scmp.ne.s32.totalorder %s25, %s26
      %p35 = scmp.eq.s32.totalorder %s20, 0
      %p36 = por %p34, %p35
      %p37 = scmp.ne.s32.totalorder %s25, %s26
      %p38 = scmp.eq.s32.totalorder %s21, 1
      %p39 = por %p37, %p38
      %p41 = scmp.ne.s32.totalorder %s26, %s40
      %p42 = scmp.eq.s32.totalorder %s21, 0
      %p43 = por %p41, %p42
      %s44 = ssub.s32 %s15, %s22
      %p45 = scmp.eq.s32.totalorder %s44, 0
      %s47 = sadd.s32 %s46, 1
      %s48 = scalar_select %p45, %s46, %s47
      %p51 = pneg %p45
      %p52 = scmp.eq.s32.totalorder %s15, 1
      %p53 = por %p51, %p52
      %p54 = scmp.ne.s32.totalorder %s46, %s49
      %p55 = scmp.eq.s32.totalorder %s15, 0
      %p56 = por %p54, %p55
      %p57 = scmp.ne.s32.totalorder %s46, %s49
      %p58 = scmp.eq.s32.totalorder %s20, 1
      %p59 = por %p57, %p58
      %p60 = scmp.ne.s32.totalorder %s49, %s50
      %p61 = scmp.eq.s32.totalorder %s20, 0
      %p62 = por %p60, %p61
      %p63 = scmp.ne.s32.totalorder %s49, %s50
      %p64 = scmp.eq.s32.totalorder %s21, 1
      %p65 = por %p63, %p64
      %p67 = scmp.ne.s32.totalorder %s50, %s66
      %p68 = scmp.eq.s32.totalorder %s21, 0
      %p69 = por %p67, %p68
      %s70 = ssub.s32 %s15, %s22
      %p71 = scmp.eq.s32.totalorder %s70, 0
      %s73 = sadd.s32 %s72, 1
      %s74 = scalar_select %p71, %s72, %s73
      %p77 = pneg %p71
      %p78 = scmp.eq.s32.totalorder %s15, 1
      %p79 = por %p77, %p78
      %p80 = scmp.ne.s32.totalorder %s72, %s75
      %p81 = scmp.eq.s32.totalorder %s15, 0
      %p82 = por %p80, %p81
      %p83 = scmp.ne.s32.totalorder %s72, %s75
      %p84 = scmp.eq.s32.totalorder %s20, 1
      %p85 = por %p83, %p84
      %p86 = scmp.ne.s32.totalorder %s75, %s76
      %p87 = scmp.eq.s32.totalorder %s20, 0
      %p88 = por %p86, %p87
      %p89 = scmp.ne.s32.totalorder %s75, %s76
      %p90 = scmp.eq.s32.totalorder %s21, 1
      %p91 = por %p89, %p90
      %p93 = scmp.ne.s32.totalorder %s76, %s92
      %p94 = scmp.eq.s32.totalorder %s21, 0
      %p95 = por %p93, %p94
      %p96 = scmp.le.s32.totalorder 1, %s15
      %p97 = scmp.lt.s32.totalorder %s15, 3
      %p98 = pnand %p96, %p97
      %p99 = pneg %p98
      // Predicated region
      $region9: #{tpu_custom_call.1} parent=5 // pred_check
        _
      $region10: #{tpu_custom_call.1} parent=5 // pred_check_branch
        %101 = sbr.rel (%p98) target = $region12
      $region11: #{tpu_custom_call.1} parent=5 // pred_region
        %s102 = ssub.s32 %s15, 1
        // Predicated region
        $region13: #{tpu_custom_call.1} parent=11 // pred_check
          %p103 = pneg %p36
        $region14: #{tpu_custom_call.1} parent=11 // pred_check_branch
          %105 = sbr.rel (%p103) target = $region16
        $region15: #{tpu_custom_call.1} parent=11 // pred_region
          %s107 = ssub.s32 16, 16
          %108 = vsyncadd [#allocation5], %s107
          %111 = dma.hbm_to_smem %s0, 16, [#allocation2], [#allocation5]
        $region16: #{tpu_custom_call.1} parent=11 // pred_fallthru
          _
      $region12: #{tpu_custom_call.1} parent=5 // pred_fallthru
        _
      %p112 = scmp.lt.s32.totalorder %s15, 2
      // Predicated region
      $region17: #{tpu_custom_call.1} parent=5 // pred_check
        %p113 = pneg %p112
      $region18: #{tpu_custom_call.1} parent=5 // pred_check_branch
        %115 = sbr.rel (%p113) target = $region20
      $region19: #{tpu_custom_call.1} parent=5 // pred_region
        // Predicated region
        $region21: #{tpu_custom_call.1} parent=19 // pred_check
          %p116 = pneg %p56
        $region22: #{tpu_custom_call.1} parent=19 // pred_check_branch
          %118 = sbr.rel (%p116) target = $region24
        $region23: #{tpu_custom_call.1} parent=19 // pred_region
          %s119 = sand.u32 %s46, 1
          %s120 = scalar_lea.sflag [#allocation3], %s119
          %s121 = sand.u32 %s46, 1
          %s122 = smul.addr %s121, 16
          %s123 = scalar_lea.vmem [#allocation6], %s122
          %s124 = smul.u32 4, %s15
          %s126 = ssub.s32 256, 256
          %127 = vsyncadd %s120, %s126
          %s128 = smul.addr %s124, 64
          %s129 = scalar_lea.hbm %s1, %s128
          %s131 = sshll.u32 %s123, 4
          %s132 = int_to_ptr.vmem [resolvable:$true] %s131
          %134 = dma.hbm_to_vmem [thread:$0]  %s129, 256, %s132, %s120
        $region24: #{tpu_custom_call.1} parent=19 // pred_fallthru
          _
      $region20: #{tpu_custom_call.1} parent=5 // pred_fallthru
        _
      %p135 = scmp.le.s32.totalorder 1, %s15
      %p136 = scmp.lt.s32.totalorder %s15, 3
      %p137 = pnand %p135, %p136
      %p138 = pneg %p137
      // Predicated region
      $region25: #{tpu_custom_call.1} parent=5 // pred_check
        _
      $region26: #{tpu_custom_call.1} parent=5 // pred_check_branch
        %140 = sbr.rel (%p137) target = $region28
      $region27: #{tpu_custom_call.1} parent=5 // pred_region
        %s141 = ssub.s32 %s15, 1
        // Predicated region
        $region29: #{tpu_custom_call.1} parent=27 // pred_check
          %p142 = pneg %p36
        $region30: #{tpu_custom_call.1} parent=27 // pred_check_branch
          %144 = sbr.rel (%p142) target = $region32
        $region31: #{tpu_custom_call.1} parent=27 // pred_region
          %145 = dma.done [#allocation5], 16
        $region32: #{tpu_custom_call.1} parent=27 // pred_fallthru
          _
        %s146 = sand.u32 %s49, 1
        %s147 = scalar_lea.sflag [#allocation3], %s146
        %s148 = sand.u32 %s49, 1
        %s149 = smul.addr %s148, 16
        %s150 = scalar_lea.vmem [#allocation6], %s149
        // Predicated region
        $region33: #{tpu_custom_call.1} parent=27 // pred_check
          %p151 = pneg %p62
        $region34: #{tpu_custom_call.1} parent=27 // pred_check_branch
          %153 = sbr.rel (%p151) target = $region36
        $region35: #{tpu_custom_call.1} parent=27 // pred_region
          %154 = dma.done %s147, 256
        $region36: #{tpu_custom_call.1} parent=27 // pred_fallthru
          _
        %155 = sfence
        %p156 = pneg %p36
        %p157 = pneg %p33
        %s158 = sand.u32 %s49, 1
        %s159 = scalar_lea.sflag [#allocation3], %s158
        %s160 = sand.u32 %s49, 1
        %s161 = smul.addr %s160, 16
        %s162 = scalar_lea.vmem [#allocation6], %s161
        %p163 = pneg %p62
        %p164 = pneg %p59
        %p165 = pneg %p88
        %p166 = pneg %p85
        %s167 = sand.u32 %s75, 1
        %s168 = scalar_lea.sflag [#allocation4], %s167
        %s169 = sand.u32 %s75, 1
        %s170 = smul.addr %s169, 4
        %s171 = scalar_lea.vmem [#allocation7], %s170
        %s172 = smul.u32 4, %s20
        %s173 = smul.u32 4, %s20
        %v174 = vld [vmem:[%s150] sm:$0xff]
        %v175 = vld [vmem:[%s150 + $0x8] sm:$0xff]
        %s176 = sld [smem:[#allocation2]]
        %v177 = vstv %s176
        %v178 = vmul.f32 %v177, %v174
        %v179 = vmul.f32 %v177, %v175
        %s180 = sld [smem:[#allocation2 + $0x1]]
        %v181 = vstv %s180
        %v182 = vmul.f32 %v181, %v174
        %v183 = vmul.f32 %v181, %v175
        %v186 = vrot.slane %v182, 5
        %v187 = vrot.slane %v186, 4
        %v188 = vrot.slane %v183, 5
        %v189 = vrot.slane %v188, 4
        %v192 = vadd.f32 %v178, %v187
        %v193 = vadd.f32 %v179, %v189
        %s194 = sld [smem:[#allocation2 + $0x2]]
        %v195 = vstv %s194
        %v196 = vmul.f32 %v195, %v174
        %v197 = vmul.f32 %v195, %v175
        %v200 = vrot.slane %v196, 6
        %v201 = vrot.slane %v200, 4
        %v202 = vrot.slane %v197, 6
        %v203 = vrot.slane %v202, 4
        %v206 = vadd.f32 %v192, %v201
        %v207 = vadd.f32 %v193, %v203
        %s208 = sld [smem:[#allocation2 + $0x3]]
        %v209 = vstv %s208
        %v210 = vmul.f32 %v209, %v174
        %v211 = vmul.f32 %v209, %v175
        %v214 = vrot.slane %v210, 7
        %v215 = vrot.slane %v214, 4
        %v216 = vrot.slane %v211, 7
        %v217 = vrot.slane %v216, 4
        %v220 = vadd.f32 %v206, %v215
        %v221 = vadd.f32 %v207, %v217
        %s222 = sld [smem:[#allocation2 + $0x8]]
        %v223 = vstv %s222
        %v224 = vadd.f32 %v220, %v223
        %v225 = vadd.f32 %v221, %v223
        %v226 = vmax.f32 %v224, 0.0
        %v227 = vmax.f32 %v225, 0.0
        %s228 = sld [smem:[#allocation2 + $0x4]]
        %v229 = vstv %s228
        %v230 = vmul.f32 %v229, %v174
        %v231 = vmul.f32 %v229, %v175
        %s232 = sld [smem:[#allocation2 + $0x5]]
        %v233 = vstv %s232
        %v234 = vmul.f32 %v233, %v174
        %v235 = vmul.f32 %v233, %v175
        %v238 = vrot.slane %v234, 5
        %v239 = vrot.slane %v238, 4
        %v240 = vrot.slane %v235, 5
        %v241 = vrot.slane %v240, 4
        %v244 = vadd.f32 %v230, %v239
        %v245 = vadd.f32 %v231, %v241
        %s246 = sld [smem:[#allocation2 + $0x6]]
        %v247 = vstv %s246
        %v248 = vmul.f32 %v247, %v174
        %v249 = vmul.f32 %v247, %v175
        %v252 = vrot.slane %v248, 6
        %v253 = vrot.slane %v252, 4
        %v254 = vrot.slane %v249, 6
        %v255 = vrot.slane %v254, 4
        %v258 = vadd.f32 %v244, %v253
        %v259 = vadd.f32 %v245, %v255
        %s260 = sld [smem:[#allocation2 + $0x7]]
        %v261 = vstv %s260
        %v262 = vmul.f32 %v261, %v174
        %v263 = vmul.f32 %v261, %v175
        %v266 = vrot.slane %v262, 7
        %v267 = vrot.slane %v266, 4
        %v268 = vrot.slane %v263, 7
        %v269 = vrot.slane %v268, 4
        %v272 = vadd.f32 %v258, %v267
        %v273 = vadd.f32 %v259, %v269
        %s274 = sld [smem:[#allocation2 + $0x9]]
        %v275 = vstv %s274
        %v276 = vadd.f32 %v272, %v275
        %v277 = vadd.f32 %v273, %v275
        %v278 = vmax.f32 %v276, 0.0
        %v279 = vmax.f32 %v277, 0.0
        %s280 = sld [smem:[#allocation2 + $0xa]]
        %v281 = vstv %s280
        %v282 = vmul.f32 %v281, %v226
        %v283 = vmul.f32 %v281, %v227
        %s284 = sld [smem:[#allocation2 + $0xb]]
        %v285 = vstv %s284
        %v286 = vmul.f32 %v285, %v278
        %v287 = vmul.f32 %v285, %v279
        %v288 = vadd.f32 %v282, %v286
        %v289 = vadd.f32 %v283, %v287
        %s290 = sld [smem:[#allocation2 + $0xc]]
        %v291 = vstv %s290
        %v292 = vadd.f32 %v288, %v291
        %v293 = vadd.f32 %v289, %v291
        %v297 = vunpack.c.l.s4 1966171168
        %v298 = vunpack.c.0.s8 %v297
        %v299 = vlaneseq
        %v300 = vshrl.u32 %v299, 7
        %v301 = vsub.s32 %v298, %v300
        %v302 = vrot.slane %v292, %v301
        %v304 = vunpack.c.l.s4 1966171168
        %v305 = vunpack.c.0.s8 %v304
        %v306 = vlaneseq
        %v307 = vshrl.u32 %v306, 7
        %v308 = vsub.s32 %v305, %v307
        %v309 = vrot.slane %v293, %v308
        %v310 = vcombine.low %v302, %v309
        %v312 = vunpack.c.l.s4 1966171168
        %v313 = vunpack.c.0.s8 %v312
        %v314 = vlaneseq
        %v315 = vshrl.u32 %v314, 7
        %v316 = vsub.s32 %v313, %v315
        %v317 = vrot.slane %v310, %v316
        %v319 = vlaneseq
        %vm320 = vcmp.ge.s32.totalorder %v319, 0
        %vm321 = vcmp.lt.s32.totalorder %v319, 512
        %vm322 = vmand %vm320, %vm321
        %323 = vst.msk [vmem:[%s171] sm:$0xf] %vm322, %v317
        %s324 = sand.u32 %s75, 1
        %s325 = scalar_lea.sflag [#allocation4], %s324
        %s326 = sand.u32 %s75, 1
        %s327 = smul.addr %s326, 4
        %s328 = scalar_lea.vmem [#allocation7], %s327
        // Predicated region
        $region37: #{tpu_custom_call.1} parent=27 // pred_check
          %p329 = pneg %p85
        $region38: #{tpu_custom_call.1} parent=27 // pred_check_branch
          %331 = sbr.rel (%p329) target = $region40
        $region39: #{tpu_custom_call.1} parent=27 // pred_region
          %s332 = smul.u32 4, %s20
          %s334 = ssub.s32 64, 64
          %335 = vsyncadd %s325, %s334
          %s336 = smul.addr %s332, 16
          %s337 = scalar_lea.hbm %s2, %s336
          %s339 = sshll.u32 %s328, 4
          %s340 = int_to_ptr.vmem [resolvable:$true] %s339
          %342 = dma.vmem_to_hbm [thread:$0]  %s340, 64, %s337, %s325
        $region40: #{tpu_custom_call.1} parent=27 // pred_fallthru
          _
      $region28: #{tpu_custom_call.1} parent=5 // pred_fallthru
        _
      %p343 = scmp.le.s32.totalorder 2, %s15
      // Predicated region
      $region41: #{tpu_custom_call.1} parent=5 // pred_check
        %p344 = pneg %p343
      $region42: #{tpu_custom_call.1} parent=5 // pred_check_branch
        %346 = sbr.rel (%p344) target = $region44
      $region43: #{tpu_custom_call.1} parent=5 // pred_region
        %s347 = ssub.s32 %s15, 2
        // Predicated region
        $region45: #{tpu_custom_call.1} parent=43 // pred_check
          %p348 = pneg %p91
        $region46: #{tpu_custom_call.1} parent=43 // pred_check_branch
          %350 = sbr.rel (%p348) target = $region48
        $region47: #{tpu_custom_call.1} parent=43 // pred_region
          %s351 = sand.u32 %s76, 1
          %s352 = scalar_lea.sflag [#allocation4], %s351
          %s353 = sand.u32 %s76, 1
          %s354 = smul.addr %s353, 4
          %s355 = scalar_lea.vmem [#allocation7], %s354
          %356 = dma.done %s352, 64
        $region48: #{tpu_custom_call.1} parent=43 // pred_fallthru
          _
      $region44: #{tpu_custom_call.1} parent=5 // pred_fallthru
        _
    $region6: #{tpu_custom_call.1} parent=1 // loop_footer
      %s19 = sadd.s32 1, %s15
    $region7: #{tpu_custom_call.1} parent=1 // loop_footer_branch
      %14 = sbr.rel target = $region3
    $region8: #{tpu_custom_call.1} parent=1 // loop_exit
      _
    %357 = vsyncpa [#allocation3], 1
    %s358 = scalar_lea.sflag [#allocation3], 1
    %359 = vsyncpa %s358, 1
    %360 = vsyncpa [#allocation4], 1
    %s361 = scalar_lea.sflag [#allocation4], 1
    %362 = vsyncpa %s361, 1
    %363 = vsyncpa [#allocation5], 1
    %s364 = scalar_lea.sflag [#allocation5], 1
    %365 = vsyncpa %s364, 1

</llo_original>
